<compile_context>
chip_gen: v5e
topology: v5e:2x2
jax: 0.10.0
libtpu: 0.0.40
codegen_flags: <defaults>
</compile_context>

<pallas_src>
import math

import jax
import jax.numpy as jnp
from jax import lax
from jax.experimental import pallas as pl
from jax.experimental.pallas import tpu as pltpu


def _round_up(x: int, m: int) -> int:
    return ((x + m - 1) // m) * m


def _sublane_granularity(dtype) -> int:
    # f32 -> 8, bf16 -> 16, int8/fp8 -> 32 (sub-32-bit packs along sublanes).
    return max(8, 32 // max(jnp.dtype(dtype).itemsize, 1))


def _choose_tile(dim: int, target: int, gran: int) -> int:
    """Largest multiple of `gran` that divides `dim` and is <= max(target, gran).

    `dim` must already be a multiple of `gran`.
    """
    if dim <= target:
        return dim
    t = max((target // gran) * gran, gran)
    while t > gran and dim % t != 0:
        t -= gran
    return t


def _matmul_bias_kernel(x_ref, w_ref, b_ref, o_ref, acc_ref):
    # x_ref: (tm, tk) input tile
    # w_ref: (tn, tk) weight tile in native nn.Linear layout (out_dim, in_dim)
    # b_ref: (1,  tn) bias tile
    # o_ref: (tm, tn) output tile
    # acc_ref: (tm, tn) f32 accumulator, resident across the K grid axis
    @pl.when(pl.program_id(2) == 0)
    def _():
        # Fold the bias into the accumulator init (single add per output tile).
        acc_ref[...] = jnp.broadcast_to(
            b_ref[...].astype(jnp.float32), acc_ref.shape
        )

    acc_ref[...] += lax.dot_general(
        x_ref[...],
        w_ref[...],
        dimension_numbers=(((1,), (1,)), ((), ())),  # contract K of x with K of W
        preferred_element_type=jnp.float32,
    )

    @pl.when(pl.program_id(2) == pl.num_programs(2) - 1)
    def _():
        o_ref[...] = acc_ref[...].astype(o_ref.dtype)


def _matmul_kernel(x_ref, w_ref, o_ref, acc_ref):
    @pl.when(pl.program_id(2) == 0)
    def _():
        acc_ref[...] = jnp.zeros_like(acc_ref)

    acc_ref[...] += lax.dot_general(
        x_ref[...],
        w_ref[...],
        dimension_numbers=(((1,), (1,)), ((), ())),
        preferred_element_type=jnp.float32,
    )

    @pl.when(pl.program_id(2) == pl.num_programs(2) - 1)
    def _():
        o_ref[...] = acc_ref[...].astype(o_ref.dtype)


def linear_forward(
    x,
    weight,
    bias=None,
    *,
    tm=256,
    tn=512,
    tk=1024,
    vmem_budget_bytes=24 * 1024 * 1024,
):
    """Fully-connected forward: x @ weight.T + bias.

    x:      (..., in_dim)
    weight: (out_dim, in_dim)   (PyTorch nn.Linear layout, used as-is)
    bias:   (out_dim,) or None
    """
    out_dim, in_dim = weight.shape
    orig_lead = x.shape[:-1]
    x2 = x.reshape(-1, in_dim)
    if weight.dtype != x2.dtype:
        weight = weight.astype(x2.dtype)
    M, K = x2.shape
    N = out_dim

    # Pad only to hardware granularity (not to tile multiples).
    sub = _sublane_granularity(x2.dtype)
    Mp = _round_up(max(M, 1), sub)
    Kp = _round_up(K, 128)
    Np = _round_up(N, 128)

    # Tiles must divide the (hardware-granularity-padded) dims exactly.
    tm = _choose_tile(Mp, tm, sub)
    tn = _choose_tile(Np, tn, 128)
    tk = _choose_tile(Kp, tk, 128)

    # Megacore / v7x: keep >= 2 parallel output tiles when the M axis collapses
    # to a single tile (typical small-batch linear), so both TCs get work.
    if Mp // tm == 1 and Np // tn < 2 and Np >= 512:
        tn = _choose_tile(Np, max(256, (Np // 2) // 128 * 128), 128)

    # VMEM working-set budget (double-buffered inputs/outputs + f32 acc),
    # conservative for v7x's 64 MiB per-TC VMEM.
    xb = x2.dtype.itemsize
    wb = weight.dtype.itemsize

    def _working_set(tm_, tn_, tk_):
        return (
            2 * tm_ * tk_ * xb      # x tiles (double buffered)
            + 2 * tk_ * tn_ * wb    # weight tiles
            + 2 * tm_ * tn_ * xb    # output tiles
            + tm_ * tn_ * 4         # f32 accumulator
            + 2 * tn_ * 4           # bias tiles (upper bound)
        )

    while _working_set(tm, tn, tk) > vmem_budget_bytes and tk > 128:
        tk = _choose_tile(Kp, tk - 128, 128)
    while _working_set(tm, tn, tk) > vmem_budget_bytes and tn > 128:
        tn = _choose_tile(Np, tn - 128, 128)
    while _working_set(tm, tn, tk) > vmem_budget_bytes and tm > sub:
        tm = _choose_tile(Mp, tm - sub, sub)

    # Pad only when needed (skip the extra HBM pass for aligned shapes).
    xp = x2 if (Mp == M and Kp == K) else jnp.pad(x2, ((0, Mp - M), (0, Kp - K)))
    wp = (
        weight
        if (Np == N and Kp == K)
        else jnp.pad(weight, ((0, Np - N), (0, Kp - K)))
    )

    grid = (Mp // tm, Np // tn, Kp // tk)

    in_specs = [
        pl.BlockSpec((tm, tk), lambda i, j, k: (i, k)),   # x tile
        pl.BlockSpec((tn, tk), lambda i, j, k: (j, k)),   # weight tile (native layout)
    ]
    args = [xp, wp]
    if bias is not None:
        bias = bias.astype(x2.dtype)
        bp = bias if Np == N else jnp.pad(bias, (0, Np - N))
        bp = bp.reshape(1, Np)
        in_specs.append(pl.BlockSpec((1, tn), lambda i, j, k: (0, j)))
        args.append(bp)
        kernel = _matmul_bias_kernel
    else:
        kernel = _matmul_kernel

    cost = pl.CostEstimate(
        flops=2 * Mp * Np * Kp,
        bytes_accessed=Mp * Kp * xb + Np * Kp * wb + Mp * Np * xb,
        transcendentals=0,
    )

    out = pl.pallas_call(
        kernel,
        out_shape=jax.ShapeDtypeStruct((Mp, Np), x.dtype),
        grid_spec=pltpu.PrefetchScalarGridSpec(
            num_scalar_prefetch=0,
            grid=grid,
            in_specs=in_specs,
            out_specs=pl.BlockSpec((tm, tn), lambda i, j, k: (i, j)),
            scratch_shapes=[pltpu.VMEM((tm, tn), jnp.float32)],
        ),
        compiler_params=pltpu.CompilerParams(
            dimension_semantics=("parallel", "parallel", "arbitrary"),
            vmem_limit_bytes=32 * 1024 * 1024,
        ),
        cost_estimate=cost,
    )(*args)

    if Mp != M or Np != N:
        out = out[:M, :N]
    return out.reshape(*orig_lead, N)


def _default_init_weight(key, shape, init_scale=1.0, dtype=jnp.float32):
    """Mimics default_init: variance_scaling(scale, 'fan_avg', 'uniform')."""
    out_dim, in_dim = shape
    scale = init_scale if init_scale > 0 else 1e-10
    fan_avg = (in_dim + out_dim) / 2.0
    limit = math.sqrt(3.0 * scale / fan_avg)
    return jax.random.uniform(key, shape, dtype, minval=-limit, maxval=limit)


if __name__ == "__main__":
    key = jax.random.PRNGKey(0)
    kx1, kw1, kx2, kw2, kb2, kx3, kw3 = jax.random.split(key, 7)

    # Test 1: module-faithful instantiation (zero bias), unaligned N/K,
    # leading batch dims flattened by the wrapper.
    B, S, IN_DIM, OUT_DIM = 2, 8, 32, 48
    x1 = jax.random.normal(kx1, (B, S, IN_DIM), dtype=jnp.float32)
    w1 = _default_init_weight(kw1, (OUT_DIM, IN_DIM), init_scale=1.0)
    b1 = jnp.zeros((OUT_DIM,), dtype=jnp.float32)  # nn.init.zeros_
    out1 = jax.block_until_ready(linear_forward(x1, w1, b1))
    ref1 = x1 @ w1.T + b1
    assert out1.shape == (B, S, OUT_DIM)
    assert jnp.allclose(out1, ref1, atol=1e-3, rtol=1e-3)

    # Test 2: multi-tile grid (2x2x2) exercising the K accumulator and a
    # non-zero bias fused at k==0.
    M2, K2, N2 = 16, 256, 256
    x2 = jax.random.normal(kx2, (M2, K2), dtype=jnp.float32)
    w2 = _default_init_weight(kw2, (N2, K2), init_scale=1.0)
    b2 = 0.5 * jax.random.normal(kb2, (N2,), dtype=jnp.float32)
    out2 = jax.block_until_ready(
        linear_forward(x2, w2, b2, tm=8, tn=128, tk=128)
    )
    ref2 = x2 @ w2.T + b2
    assert jnp.allclose(out2, ref2, atol=1e-3, rtol=1e-3)

    # Test 3: bias-less kernel variant with padding on all three dims.
    M3, K3, N3 = 4, 100, 64
    x3 = jax.random.normal(kx3, (M3, K3), dtype=jnp.float32)
    w3 = _default_init_weight(kw3, (N3, K3), init_scale=1.0)
    out3 = jax.block_until_ready(linear_forward(x3, w3, None))
    ref3 = x3 @ w3.T
    assert jnp.allclose(out3, ref3, atol=1e-3, rtol=1e-3)

    print("KERNEL_OK")
</pallas_src>

<mosaic_0001>
module attributes {stable_mosaic.version = 11 : i64} {
  func.func @_matmul_bias_kernel(%arg0: i32, %arg1: i32, %arg2: i32, %arg3: memref<16x128xf32, #tpu.memory_space<vmem>>, %arg4: memref<128x128xf32, #tpu.memory_space<vmem>>, %arg5: memref<1x128xf32, #tpu.memory_space<vmem>>, %arg6: memref<16x128xf32, #tpu.memory_space<vmem>>, %arg7: memref<16x128xf32, #tpu.memory_space<vmem>>) attributes {dimension_semantics = [#tpu.dimension_semantics<parallel>, #tpu.dimension_semantics<parallel>, #tpu.dimension_semantics<arbitrary>], iteration_bounds = array<i64: 1, 1, 1>, scalar_prefetch = 0 : i64, scratch_operands = 1 : i64, tpu.core_type = #tpu.core_type<tc>, window_params = [{transform_indices = @transform_0, window_bounds = array<i64: 16, 128>}, {transform_indices = @transform_1, window_bounds = array<i64: 128, 128>}, {transform_indices = @transform_2, window_bounds = array<i64: 1, 128>}, {transform_indices = @transform_3, window_bounds = array<i64: 16, 128>}]} {
    %c0_i32 = arith.constant 0 : i32
    %0 = arith.cmpi eq, %arg2, %c0_i32 : i32
    %1 = arith.extui %0 : i1 to i32
    %c0_i32_0 = arith.constant 0 : i32
    %2 = arith.cmpi ne, %1, %c0_i32_0 : i32
    scf.if %2 {
      %c0_10 = arith.constant 0 : index
      %c0_11 = arith.constant 0 : index
      %12 = vector.load %arg5[%c0_10, %c0_11] : memref<1x128xf32, #tpu.memory_space<vmem>>, vector<1x128xf32>
      %13 = vector.shape_cast %12 : vector<1x128xf32> to vector<1x128xf32>
      %14 = vector.broadcast %13 : vector<1x128xf32> to vector<16x128xf32>
      %c0_12 = arith.constant 0 : index
      %c0_13 = arith.constant 0 : index
      %15 = vector.load %arg7[%c0_12, %c0_13] : memref<16x128xf32, #tpu.memory_space<vmem>>, vector<16x128xf32>
      tpu.vector_store %arg7[%c0_12, %c0_13], %14 {strides = array<i32>} : memref<16x128xf32, #tpu.memory_space<vmem>>, vector<16x128xf32>,
    } else {
    }
    %c0 = arith.constant 0 : index
    %c0_1 = arith.constant 0 : index
    %3 = vector.load %arg7[%c0, %c0_1] : memref<16x128xf32, #tpu.memory_space<vmem>>, vector<16x128xf32>
    %c0_2 = arith.constant 0 : index
    %c0_3 = arith.constant 0 : index
    %4 = vector.load %arg3[%c0_2, %c0_3] : memref<16x128xf32, #tpu.memory_space<vmem>>, vector<16x128xf32>
    %c0_4 = arith.constant 0 : index
    %c0_5 = arith.constant 0 : index
    %5 = vector.load %arg4[%c0_4, %c0_5] : memref<128x128xf32, #tpu.memory_space<vmem>>, vector<128x128xf32>
    %cst = arith.constant dense<0.000000e+00> : vector<16x128xf32>
    %6 = tpu.matmul %4, %5, %cst {dimension_numbers = #tpu.dot_dimension_numbers<[1], [1], [0], [0], [0, 0, 1, 0], [], []>} : vector<16x128xf32>, vector<128x128xf32>, vector<16x128xf32> -> vector<16x128xf32>
    %7 = arith.addf %3, %6 : vector<16x128xf32>
    %c0_6 = arith.constant 0 : index
    %c0_7 = arith.constant 0 : index
    %8 = vector.load %arg7[%c0_6, %c0_7] : memref<16x128xf32, #tpu.memory_space<vmem>>, vector<16x128xf32>
    tpu.vector_store %arg7[%c0_6, %c0_7], %7 {strides = array<i32>} : memref<16x128xf32, #tpu.memory_space<vmem>>, vector<16x128xf32>,
    %c0_i32_8 = arith.constant 0 : i32
    %9 = arith.cmpi eq, %arg2, %c0_i32_8 : i32
    %10 = arith.extui %9 : i1 to i32
    %c0_i32_9 = arith.constant 0 : i32
    %11 = arith.cmpi ne, %10, %c0_i32_9 : i32
    scf.if %11 {
      %c0_10 = arith.constant 0 : index
      %c0_11 = arith.constant 0 : index
      %12 = vector.load %arg7[%c0_10, %c0_11] : memref<16x128xf32, #tpu.memory_space<vmem>>, vector<16x128xf32>
      %c0_12 = arith.constant 0 : index
      %c0_13 = arith.constant 0 : index
      %13 = vector.load %arg6[%c0_12, %c0_13] : memref<16x128xf32, #tpu.memory_space<vmem>>, vector<16x128xf32>
      tpu.vector_store %arg6[%c0_12, %c0_13], %12 {strides = array<i32>} : memref<16x128xf32, #tpu.memory_space<vmem>>, vector<16x128xf32>,
    } else {
    }
    return
  }
  func.func @transform_0(%arg0: i32, %arg1: i32, %arg2: i32) -> (i32, i32) {
    %c0_i32 = arith.constant 0 : i32
    return %arg0, %arg2 : i32, i32
  }
  func.func @transform_1(%arg0: i32, %arg1: i32, %arg2: i32) -> (i32, i32) {
    %c0_i32 = arith.constant 0 : i32
    return %arg1, %arg2 : i32, i32
  }
  func.func @transform_2(%arg0: i32, %arg1: i32, %arg2: i32) -> (i32, i32) {
    %c0_i32 = arith.constant 0 : i32
    %c0_i32_0 = arith.constant 0 : i32
    return %c0_i32, %arg1 : i32, i32
  }
  func.func @transform_3(%arg0: i32, %arg1: i32, %arg2: i32) -> (i32, i32) {
    %c0_i32 = arith.constant 0 : i32
    return %arg0, %arg1 : i32, i32
  }
}

</mosaic_0001>

<llo_original>
// kernel: tpu_custom_call.1
$region0: #{tpu_custom_call.1}
  #allocation0 [shape = 'u32[]', space=smem, size = 0x4, offset = 0x4, fixed_abs, tag = 'smem constant byte address 0x4 - core index']
  #allocation1 [shape = 'u32[72,128]{1,0:T(1,128)}', space=vmem, size = 0x9000, scoped, tag = 'internal scratch']
  #allocation2 [shape = 'f32[16,128]{1,0:T(8,128)}', space=vmem, size = 0x2000, scoped, tag = 'scratch operand']
  %s0 = inlined_call_operand.hbm [shape: f32[16,128], index: 0, kind: input, shape index: {}]
  %s1 = inlined_call_operand.hbm [shape: f32[128,128], index: 1, kind: input, shape index: {}]
  %s2 = inlined_call_operand.vmem [shape: f32[1,128], index: 2, kind: input, shape index: {}]
  %s3 = inlined_call_operand.hbm [shape: f32[16,128], index: 3, kind: output, shape index: {}]
  %s4 = sld [smem:[#allocation0]]
  $region38: #{tpu_custom_call.1} parent=0
    _
  %s6 = ssub.s32 1, %s4
  %s7 = scalar_select 0, %s6, %s4
  $region1: #{tpu_custom_call.1} parent=0
    #allocation3 [shape = 'u8[8192]{0}', space=vmem, size = 0x2000, scoped, tag = 'input window, operand 0, single buffered']
    #allocation4 [shape = 's32[1]{0}', space=sflag, size = 0x4, scoped, tag = 'scoped memory for tpu_custom_call.1']
    #allocation5 [shape = 's32[1]{0}', space=sflag, size = 0x4, scoped, tag = 'scoped memory for tpu_custom_call.1']
    #allocation6 [shape = 'u8[65536]{0}', space=vmem, size = 0x10000, scoped, tag = 'input window, operand 1, single buffered']
    #allocation7 [shape = 's32[1]{0}', space=sflag, size = 0x4, scoped, tag = 'scoped memory for tpu_custom_call.1']
    #allocation8 [shape = 'u8[8192]{0}', space=vmem, size = 0x2000, scoped, tag = 'output window, operand 0, single buffered']
    %8 = vsyncpa [#allocation4], 0
    %9 = vsyncpa [#allocation7], 0
    %10 = vsyncpa [#allocation5], 0
    // Predicated region
    $region2: #{tpu_custom_call.1} parent=1 // pred_check
      _
    $region3: #{tpu_custom_call.1} parent=1 // pred_check_branch
      %12 = sbr.rel (0) target = $region5
    $region4: #{tpu_custom_call.1} parent=1 // pred_region
      %14 = vsyncadd [#allocation4], 0
      %s15 = sshll.u32 %s0, 4
      %s16 = int_to_ptr.hbm [resolvable:$true] %s15
      %s17 = sshll.u32 [#allocation3], 4
      %s18 = int_to_ptr.vmem [resolvable:$true] %s17
      %23 = dma.hbm_to_vmem [thread:$0]  %s16, 256, %s18, [#allocation4], 128, 128, 8
    $region5: #{tpu_custom_call.1} parent=1 // pred_fallthru
      _
    // Predicated region
    $region6: #{tpu_custom_call.1} parent=1 // pred_check
      _
    $region7: #{tpu_custom_call.1} parent=1 // pred_check_branch
      %25 = sbr.rel (0) target = $region9
    $region8: #{tpu_custom_call.1} parent=1 // pred_region
      %27 = vsyncadd [#allocation7], 0
      %s28 = sshll.u32 %s1, 4
      %s29 = int_to_ptr.hbm [resolvable:$true] %s28
      %s30 = sshll.u32 [#allocation6], 4
      %s31 = int_to_ptr.vmem [resolvable:$true] %s30
      %36 = dma.hbm_to_vmem [thread:$0]  %s29, 2048, %s31, [#allocation7], 128, 128, 8
    $region9: #{tpu_custom_call.1} parent=1 // pred_fallthru
      _
    // Predicated region
    $region10: #{tpu_custom_call.1} parent=1 // pred_check
      _
    $region11: #{tpu_custom_call.1} parent=1 // pred_check_branch
      %38 = sbr.rel (0) target = $region13
    $region12: #{tpu_custom_call.1} parent=1 // pred_region
      _
    $region13: #{tpu_custom_call.1} parent=1 // pred_fallthru
      _
    // Predicated region
    $region14: #{tpu_custom_call.1} parent=1 // pred_check
      _
    $region15: #{tpu_custom_call.1} parent=1 // pred_check_branch
      %40 = sbr.rel (0) target = $region17
    $region16: #{tpu_custom_call.1} parent=1 // pred_region
      %42 = dma.done [#allocation4], 256
    $region17: #{tpu_custom_call.1} parent=1 // pred_fallthru
      _
    // Predicated region
    $region18: #{tpu_custom_call.1} parent=1 // pred_check
      _
    $region19: #{tpu_custom_call.1} parent=1 // pred_check_branch
      %44 = sbr.rel (0) target = $region21
    $region20: #{tpu_custom_call.1} parent=1 // pred_region
      %46 = dma.done [#allocation7], 2048
    $region21: #{tpu_custom_call.1} parent=1 // pred_fallthru
      _
    %p47 = scmp.eq.s32.totalorder 0, 0
    // Predicated region
    $region22: #{tpu_custom_call.1} parent=1 // pred_check
      %p48 = pneg %p47
    $region23: #{tpu_custom_call.1} parent=1 // pred_check_branch
      %50 = sbr.rel (%p48) target = $region25
    $region24: #{tpu_custom_call.1} parent=1 // pred_region
      %v51 = vld [vmem:[%s2] sm:$0x1]
      %v53 = vperm.slane %v51, 0
      %55 = vst [vmem:[#allocation2] sm:$0xff] %v53
      %56 = vst [vmem:[#allocation2 + $0x8] sm:$0xff] %v53
    $region25: #{tpu_custom_call.1} parent=1 // pred_fallthru
      _
    %v57 = vld [vmem:[#allocation2] sm:$0xff]
    %v58 = vld [vmem:[#allocation2 + $0x8] sm:$0xff]
    %v59 = vld [vmem:[#allocation3] sm:$0xff]
    %v60 = vld [vmem:[#allocation3 + $0x8] sm:$0xff]
    %v61 = vld [vmem:[#allocation6] sm:$0xff]
    %v62 = vld [vmem:[#allocation6 + $0x8] sm:$0xff]
    %v63 = vld [vmem:[#allocation6 + $0x10] sm:$0xff]
    %v64 = vld [vmem:[#allocation6 + $0x18] sm:$0xff]
    %v65 = vld [vmem:[#allocation6 + $0x20] sm:$0xff]
    %v66 = vld [vmem:[#allocation6 + $0x28] sm:$0xff]
    %v67 = vld [vmem:[#allocation6 + $0x30] sm:$0xff]
    %v68 = vld [vmem:[#allocation6 + $0x38] sm:$0xff]
    %v69 = vld [vmem:[#allocation6 + $0x40] sm:$0xff]
    %v70 = vld [vmem:[#allocation6 + $0x48] sm:$0xff]
    %v71 = vld [vmem:[#allocation6 + $0x50] sm:$0xff]
    %v72 = vld [vmem:[#allocation6 + $0x58] sm:$0xff]
    %v73 = vld [vmem:[#allocation6 + $0x60] sm:$0xff]
    %v74 = vld [vmem:[#allocation6 + $0x68] sm:$0xff]
    %v75 = vld [vmem:[#allocation6 + $0x70] sm:$0xff]
    %v76 = vld [vmem:[#allocation6 + $0x78] sm:$0xff]
    %77 = vmatpush.xpose.msra.mxu0 %v76
    %78 = vmatpush.xpose.msra.mxu0 %v75
    %79 = vmatpush.xpose.msra.mxu0 %v74
    %80 = vmatpush.xpose.msra.mxu0 %v73
    %81 = vmatpush.xpose.msra.mxu0 %v72
    %82 = vmatpush.xpose.msra.mxu0 %v71
    %83 = vmatpush.xpose.msra.mxu0 %v70
    %84 = vmatpush.xpose.msra.mxu0 %v69
    %85 = vmatpush.xpose.msra.mxu0 %v68
    %86 = vmatpush.xpose.msra.mxu0 %v67
    %87 = vmatpush.xpose.msra.mxu0 %v66
    %88 = vmatpush.xpose.msra.mxu0 %v65
    %89 = vmatpush.xpose.msra.mxu0 %v64
    %90 = vmatpush.xpose.msra.mxu0 %v63
    %91 = vmatpush.xpose.msra.mxu0 %v62
    %92 = vmatpush.xpose.msra.mxu0 %v61
    %93 = vmatmul.f32.gmra.mxu0 %v59
    %v94 = vpop.f32.mrf.mxu0
    %v95 = vadd.f32 0.0, %v94
    %96 = vmatmul.f32.gmra.mxu0 %v60
    %v97 = vpop.f32.mrf.mxu0
    %v98 = vadd.f32 0.0, %v97
    %99 = vdwg.mxu0
    %v100 = vadd.f32 %v57, %v95
    %v101 = vadd.f32 %v58, %v98
    %102 = vst [vmem:[#allocation2] sm:$0xff] %v100
    %103 = vst [vmem:[#allocation2 + $0x8] sm:$0xff] %v101
    // Predicated region
    $region26: #{tpu_custom_call.1} parent=1 // pred_check
      %p104 = pneg %p47
    $region27: #{tpu_custom_call.1} parent=1 // pred_check_branch
      %106 = sbr.rel (%p104) target = $region29
    $region28: #{tpu_custom_call.1} parent=1 // pred_region
      %v107 = vld [vmem:[#allocation2] sm:$0xff]
      %v108 = vld [vmem:[#allocation2 + $0x8] sm:$0xff]
      %109 = vst [vmem:[#allocation8] sm:$0xff] %v107
      %110 = vst [vmem:[#allocation8 + $0x8] sm:$0xff] %v108
    $region29: #{tpu_custom_call.1} parent=1 // pred_fallthru
      _
    // Predicated region
    $region30: #{tpu_custom_call.1} parent=1 // pred_check
      _
    $region31: #{tpu_custom_call.1} parent=1 // pred_check_branch
      %112 = sbr.rel (0) target = $region33
    $region32: #{tpu_custom_call.1} parent=1 // pred_region
      %114 = vsyncadd [#allocation5], 0
      %s115 = sshll.u32 [#allocation8], 4
      %s116 = int_to_ptr.vmem [resolvable:$true] %s115
      %s117 = sshll.u32 %s3, 4
      %s118 = int_to_ptr.hbm [resolvable:$true] %s117
      %123 = dma.vmem_to_hbm [thread:$0]  %s116, 256, %s118, [#allocation5], 128, 128, 8
    $region33: #{tpu_custom_call.1} parent=1 // pred_fallthru
      _
    // Predicated region
    $region34: #{tpu_custom_call.1} parent=1 // pred_check
      _
    $region35: #{tpu_custom_call.1} parent=1 // pred_check_branch
      %125 = sbr.rel (0) target = $region37
    $region36: #{tpu_custom_call.1} parent=1 // pred_region
      %127 = dma.done [#allocation5], 256
    $region37: #{tpu_custom_call.1} parent=1 // pred_fallthru
      _
    %128 = vsyncpa [#allocation4], 1
    %129 = vsyncpa [#allocation7], 1
    %130 = vsyncpa [#allocation5], 1

</llo_original>
